<compile_context>
chip_gen: v5e
topology: v5e:2x2
jax: 0.10.0
libtpu: 0.0.40
codegen_flags: <defaults>
</compile_context>

<pallas_src>
import math

import jax
import jax.numpy as jnp
from jax.experimental import pallas as pl
from jax.experimental.pallas import tpu as pltpu


# --------------------------------------------------------------------------
# Parameter/buffer setup (pure JAX glue, identical to the PyTorch buffer).
# --------------------------------------------------------------------------
def _build_pe(embed_size: int, max_len: int = 5000, dtype=jnp.float32) -> jnp.ndarray:
    """Replicates the PositionalEncoding buffer: shape (max_len, 1, embed_size)."""
    # PyTorch's pe[:, 1::2] = cos(...) only type-checks for even embed_size.
    assert embed_size % 2 == 0, "PositionalEncoding requires an even embed_size"
    position = jnp.arange(0, max_len, dtype=jnp.float32)[:, None]               # (max_len, 1)
    div_term = jnp.exp(
        jnp.arange(0, embed_size, 2, dtype=jnp.float32)
        * (-math.log(10000.0) / embed_size)
    )                                                                            # (E/2,)
    ang = position * div_term                                                    # (max_len, E/2)
    # interleave: pe[:, 0::2] = sin, pe[:, 1::2] = cos
    pe = jnp.stack([jnp.sin(ang), jnp.cos(ang)], axis=-1).reshape(max_len, embed_size)
    # unsqueeze(0).transpose(0, 1) -> (max_len, 1, embed_size)
    return pe[:, None, :].astype(dtype)


# --------------------------------------------------------------------------
# Kernel body: one broadcast elementwise add per tile (the hot path).
# --------------------------------------------------------------------------
def _add_kernel(x_ref, pe_ref, o_ref):
    # 3-D path: x (ts, B, E) + pe (ts, 1, E)  -> cheap sublane broadcast.
    # 2-D path: x (tr, L)    + pe (tr, L)     -> exact-shape add.
    o_ref[...] = x_ref[...] + pe_ref[...]


# --------------------------------------------------------------------------
# Tiling helpers.
# --------------------------------------------------------------------------
def _vmem_plan():
    """Return (vmem_limit_bytes, target_x_block_bytes), generation-aware."""
    cap = None
    try:
        cap = getattr(pltpu.get_tpu_info(), "vmem_capacity_bytes", None)
    except Exception:
        cap = None
    if cap is None:
        # Unknown generation: conservative plan that is valid everywhere.
        return 32 << 20, 4 << 20
    if cap <= (64 << 20):
        # v7x-class: 64 MiB physical VMEM per TensorCore.
        limit = min(48 << 20, (cap * 3) // 4)
        target = max(1 << 20, min(8 << 20, limit // 6))
        return limit, target
    # v5e / v6e: 128 MiB physical -> half the scratchpad is plenty.
    return 64 << 20, 8 << 20


def _choose_leading_tile(n_rows: int, row_bytes: int, target_bytes: int,
                         min_steps: int = 4) -> int:
    """Tile the leading axis: ~target_bytes blocks, keep ~min_steps grid steps
    when the array is big enough (pipelining + v7x megacore), rows a multiple
    of 8 for layout friendliness."""
    t = max(8, target_bytes // max(row_bytes, 1))
    t = min(t, max(8, pl.cdiv(n_rows, min_steps)))
    t = max(8, (t // 8) * 8)
    return min(t, n_rows)


def _fold_factor(S: int, row: int) -> int:
    """Largest divisor g of S (stopping once g*row >= 512 lanes) such that
    g*row is a multiple of 128 -> folded rows are lane-dense."""
    best = 1
    for g in range(1, S + 1):
        if S % g:
            continue
        if (g * row) % 128 == 0:
            best = g
            if g * row >= 512:
                break
    return best


# --------------------------------------------------------------------------
# Pallas forward.
# --------------------------------------------------------------------------
def _pe_add(x: jnp.ndarray, pe_slice: jnp.ndarray, *, seq_tile=None) -> jnp.ndarray:
    """x: (S, B, E); pe_slice: (S, 1, E) already in x.dtype. Returns x + pe_slice."""
    S, B, E = x.shape
    assert pe_slice.shape == (S, 1, E)

    itemsize = jnp.dtype(x.dtype).itemsize
    vmem_limit, target_bytes = _vmem_plan()

    sub_b = pl.cdiv(B, 8) * 8          # sublanes the batch dim pads to
    lane_e = pl.cdiv(E, 128) * 128     # lanes the embed dim pads to
    pad_waste = (sub_b * lane_e) / float(B * E)
    # Lane-dense fallback only when the (B, E) trailing dims waste >= 2x of
    # each vreg tile AND B*E is small (extra pe traffic stays cheap).
    use_flat = pad_waste >= 2.0 and (B * E) <= 4096

    compiler_params = pltpu.CompilerParams(
        dimension_semantics=("parallel",),
        vmem_limit_bytes=vmem_limit,
    )

    if not use_flat:
        # ---- Primary path: (ts, B, E) blocks, pe stays (ts, 1, E). ----
        x_row_bytes = sub_b * lane_e * itemsize
        ts = int(seq_tile) if seq_tile is not None else _choose_leading_tile(
            S, x_row_bytes, target_bytes)
        ts = max(1, min(ts, S))
        grid = (pl.cdiv(S, ts),)
        return pl.pallas_call(
            _add_kernel,
            out_shape=jax.ShapeDtypeStruct((S, B, E), x.dtype),
            grid_spec=pltpu.PrefetchScalarGridSpec(
                num_scalar_prefetch=0,
                grid=grid,
                in_specs=[
                    # Trailing block dims are the full (B, E) / (1, E) extents
                    # -> satisfies the (8, 128) rule for any B, E.
                    pl.BlockSpec((ts, B, E), lambda i: (i, 0, 0)),
                    pl.BlockSpec((ts, 1, E), lambda i: (i, 0, 0)),
                ],
                out_specs=pl.BlockSpec((ts, B, E), lambda i: (i, 0, 0)),
            ),
            input_output_aliases={0: 0},
            compiler_params=compiler_params,
        )(x, pe_slice)

    # ---- Lane-dense fallback: fold seq rows into 128-multiple-wide rows. ----
    row = B * E
    g = _fold_factor(S, row)
    R, L = S // g, g * row
    x2 = x.reshape(R, L)                                         # free bitcast
    pe2 = jnp.broadcast_to(pe_slice, (S, B, E)).reshape(R, L)    # small-B*E regime only

    row_bytes = (pl.cdiv(L, 128) * 128) * itemsize
    # 3 streams (x, pe, out), double-buffered -> cap each block at ~limit/8.
    flat_target = max(1 << 20, min(target_bytes, vmem_limit // 8))
    tr = _choose_leading_tile(R, row_bytes, flat_target)
    tr = max(1, min(tr, R))
    grid = (pl.cdiv(R, tr),)
    out2 = pl.pallas_call(
        _add_kernel,
        out_shape=jax.ShapeDtypeStruct((R, L), x.dtype),
        grid_spec=pltpu.PrefetchScalarGridSpec(
            num_scalar_prefetch=0,
            grid=grid,
            in_specs=[
                pl.BlockSpec((tr, L), lambda i: (i, 0)),
                pl.BlockSpec((tr, L), lambda i: (i, 0)),
            ],
            out_specs=pl.BlockSpec((tr, L), lambda i: (i, 0)),
        ),
        input_output_aliases={0: 0},
        compiler_params=compiler_params,
    )(x2, pe2)
    return out2.reshape(S, B, E)


def positional_encoding_forward(x: jnp.ndarray, pe: jnp.ndarray, *, seq_tile=None) -> jnp.ndarray:
    """Functional entry point: x (S, B, E), pe (max_len, 1, E)."""
    S, B, E = x.shape
    assert S <= pe.shape[0], f"sequence length {S} exceeds max_len {pe.shape[0]}"
    assert pe.shape[1] == 1 and pe.shape[2] == E, "pe shape mismatch"
    pe_slice = pe[:S].astype(x.dtype)   # glue; the class below caches this
    return _pe_add(x, pe_slice, seq_tile=seq_tile)


class PositionalEncoding:
    """JAX/Pallas counterpart of the PyTorch module (seq-first layout)."""

    def __init__(self, embed_size: int, max_len: int = 5000, dtype=jnp.float32):
        self.embed_size = embed_size
        self.max_len = max_len
        self.pe = _build_pe(embed_size, max_len, dtype)   # (max_len, 1, E)
        self._slice_cache = {}

    def _pe_slice(self, S: int, dtype) -> jnp.ndarray:
        # Cache pe[:S].astype(dtype) once per (S, dtype) -> no per-forward
        # slice/cast XLA pass when the table dtype differs from activations.
        key = (int(S), jnp.dtype(dtype).name)
        if key not in self._slice_cache:
            self._slice_cache[key] = self.pe[:S].astype(dtype)
        return self._slice_cache[key]

    def __call__(self, x: jnp.ndarray) -> jnp.ndarray:
        S = x.shape[0]
        assert S <= self.max_len, f"sequence length {S} exceeds max_len {self.max_len}"
        return _pe_add(x, self._pe_slice(S, x.dtype))


if __name__ == "__main__":
    # Small shapes consistent with the module's forward: (seq, batch, embed).
    S, B, E = 256, 2, 32
    MAX_LEN = 512  # same semantics as 5000, kept small for the demo

    key = jax.random.PRNGKey(0)
    x = jax.random.normal(key, (S, B, E), dtype=jnp.float32)

    posenc = PositionalEncoding(E, max_len=MAX_LEN, dtype=jnp.float32)

    # Pure-JAX reference of the PyTorch forward, computed before the kernel
    # call (the kernel may alias/donate x's buffer to its output).
    ref = x + posenc.pe[:S]

    out = posenc(x)
    out = jax.block_until_ready(out)

    assert out.shape == (S, B, E)
    assert jnp.allclose(out, ref, atol=1e-6), "mismatch vs reference"

    print("KERNEL_OK")
</pallas_src>

<mosaic_0001>
module attributes {stable_mosaic.version = 11 : i64} {
  func.func @_add_kernel(%arg0: i32, %arg1: memref<8x512xf32, #tpu.memory_space<vmem>>, %arg2: memref<8x512xf32, #tpu.memory_space<vmem>>, %arg3: memref<8x512xf32, #tpu.memory_space<vmem>>) attributes {dimension_semantics = [#tpu.dimension_semantics<parallel>], iteration_bounds = array<i64: 4>, scalar_prefetch = 0 : i64, scratch_operands = 0 : i64, tpu.core_type = #tpu.core_type<tc>, window_params = [{transform_indices = @transform_0, window_bounds = array<i64: 8, 512>}, {transform_indices = @transform_1, window_bounds = array<i64: 8, 512>}, {transform_indices = @transform_2, window_bounds = array<i64: 8, 512>}]} {
    %c0 = arith.constant 0 : index
    %c0_0 = arith.constant 0 : index
    %0 = vector.load %arg1[%c0, %c0_0] : memref<8x512xf32, #tpu.memory_space<vmem>>, vector<8x512xf32>
    %c0_1 = arith.constant 0 : index
    %c0_2 = arith.constant 0 : index
    %1 = vector.load %arg2[%c0_1, %c0_2] : memref<8x512xf32, #tpu.memory_space<vmem>>, vector<8x512xf32>
    %2 = arith.addf %0, %1 : vector<8x512xf32>
    %c0_3 = arith.constant 0 : index
    %c0_4 = arith.constant 0 : index
    %3 = vector.load %arg3[%c0_3, %c0_4] : memref<8x512xf32, #tpu.memory_space<vmem>>, vector<8x512xf32>
    tpu.vector_store %arg3[%c0_3, %c0_4], %2 {strides = array<i32>} : memref<8x512xf32, #tpu.memory_space<vmem>>, vector<8x512xf32>,
    return
  }
  func.func @transform_0(%arg0: i32) -> (i32, i32) {
    %c0_i32 = arith.constant 0 : i32
    %c0_i32_0 = arith.constant 0 : i32
    return %arg0, %c0_i32 : i32, i32
  }
  func.func @transform_1(%arg0: i32) -> (i32, i32) {
    %c0_i32 = arith.constant 0 : i32
    %c0_i32_0 = arith.constant 0 : i32
    return %arg0, %c0_i32 : i32, i32
  }
  func.func @transform_2(%arg0: i32) -> (i32, i32) {
    %c0_i32 = arith.constant 0 : i32
    %c0_i32_0 = arith.constant 0 : i32
    return %arg0, %c0_i32 : i32, i32
  }
}

</mosaic_0001>

<llo_original>
// kernel: tpu_custom_call.1
$region0: #{tpu_custom_call.1}
  #allocation0 [shape = 'u32[]', space=smem, size = 0x4, offset = 0x4, fixed_abs, tag = 'smem constant byte address 0x4 - core index']
  #allocation1 [shape = 'u32[72,128]{1,0:T(1,128)}', space=vmem, size = 0x9000, scoped, tag = 'internal scratch']
  %s0 = inlined_call_operand.hbm [shape: f32[32,512], index: 0, kind: input, shape index: {}, may-alias: {0,2}]
  %s1 = inlined_call_operand.vmem [shape: f32[32,512], index: 1, kind: input, shape index: {}]
  %s2 = inlined_call_operand.hbm [shape: f32[32,512], index: 2, kind: output, shape index: {}, may-alias: {0,2}]
  %s3 = sld [smem:[#allocation0]]
  $region45: #{tpu_custom_call.1} parent=0
    _
  %s5 = ssub.s32 1, %s3
  %s6 = scalar_select 0, %s5, %s3
  $region1: #{tpu_custom_call.1} parent=0
    #allocation2 [shape = 'u8[32768]{0}', space=vmem, size = 0x8000, scoped, tag = 'input window, operand 0']
    #allocation3 [shape = 's32[2]{0}', space=sflag, size = 0x8, scoped, tag = 'scoped memory for tpu_custom_call.1']
    #allocation4 [shape = 's32[2]{0}', space=sflag, size = 0x8, scoped, tag = 'scoped memory for tpu_custom_call.1']
    #allocation5 [shape = 'u8[32768]{0}', space=vmem, size = 0x8000, scoped, tag = 'output window, operand 0']
    %7 = vsyncpa [#allocation3], 0
    %s8 = scalar_lea.sflag [#allocation3], 1
    %9 = vsyncpa %s8, 0
    %10 = vsyncpa [#allocation4], 0
    %s11 = scalar_lea.sflag [#allocation4], 1
    %12 = vsyncpa %s11, 0
    loop: start=0, step=1, limit=6
    $region2: #{tpu_custom_call.1} parent=1 // loop_pre_header
      _
    $region3: #{tpu_custom_call.1} parent=1 // loop_header
      %s14 = sphi 0, %s18
      %p15 = scmp.ge.s32.totalorder %s14, 6
      %s24 = sphi 0, %s26
      %s27 = sphi 0, %s24
      %s28 = sphi 0, %s27
      %s44 = sphi 0, %s28
      %s50 = sphi 0, %s52
      %s53 = sphi 0, %s50
      %s54 = sphi 0, %s53
      %s70 = sphi 0, %s54
      %s76 = sphi 0, %s78
      %s79 = sphi 0, %s76
      %s80 = sphi 0, %s79
      %s96 = sphi 0, %s80
    $region4: #{tpu_custom_call.1} parent=1 // loop_header_branch
      %17 = sbr.rel (%p15) target = $region8
    $region5: #{tpu_custom_call.1} parent=1 // loop_body
      %s19 = ssub.s32 %s14, 1
      %s20 = ssub.s32 %s14, 2
      %s21 = sadd.s32 %s14, 1
      %s22 = ssub.s32 %s14, %s21
      %p23 = scmp.eq.s32.totalorder %s22, 0
      %s25 = sadd.s32 %s24, 1
      %s26 = scalar_select %p23, %s24, %s25
      %p29 = pneg %p23
      %p30 = scmp.eq.s32.totalorder %s14, 3
      %p31 = por %p29, %p30
      %p32 = scmp.ne.s32.totalorder %s24, %s27
      %p33 = scmp.eq.s32.totalorder %s14, 0
      %p34 = por %p32, %p33
      %p35 = scmp.ne.s32.totalorder %s24, %s27
      %p36 = scmp.eq.s32.totalorder %s19, 3
      %p37 = por %p35, %p36
      %p38 = scmp.ne.s32.totalorder %s27, %s28
      %p39 = scmp.eq.s32.totalorder %s19, 0
      %p40 = por %p38, %p39
      %p41 = scmp.ne.s32.totalorder %s27, %s28
      %p42 = scmp.eq.s32.totalorder %s20, 3
      %p43 = por %p41, %p42
      %p45 = scmp.ne.s32.totalorder %s28, %s44
      %p46 = scmp.eq.s32.totalorder %s20, 0
      %p47 = por %p45, %p46
      %s48 = ssub.s32 %s14, %s21
      %p49 = scmp.eq.s32.totalorder %s48, 0
      %s51 = sadd.s32 %s50, 1
      %s52 = scalar_select %p49, %s50, %s51
      %p55 = pneg %p49
      %p56 = scmp.eq.s32.totalorder %s14, 3
      %p57 = por %p55, %p56
      %p58 = scmp.ne.s32.totalorder %s50, %s53
      %p59 = scmp.eq.s32.totalorder %s14, 0
      %p60 = por %p58, %p59
      %p61 = scmp.ne.s32.totalorder %s50, %s53
      %p62 = scmp.eq.s32.totalorder %s19, 3
      %p63 = por %p61, %p62
      %p64 = scmp.ne.s32.totalorder %s53, %s54
      %p65 = scmp.eq.s32.totalorder %s19, 0
      %p66 = por %p64, %p65
      %p67 = scmp.ne.s32.totalorder %s53, %s54
      %p68 = scmp.eq.s32.totalorder %s20, 3
      %p69 = por %p67, %p68
      %p71 = scmp.ne.s32.totalorder %s54, %s70
      %p72 = scmp.eq.s32.totalorder %s20, 0
      %p73 = por %p71, %p72
      %s74 = ssub.s32 %s14, %s21
      %p75 = scmp.eq.s32.totalorder %s74, 0
      %s77 = sadd.s32 %s76, 1
      %s78 = scalar_select %p75, %s76, %s77
      %p81 = pneg %p75
      %p82 = scmp.eq.s32.totalorder %s14, 3
      %p83 = por %p81, %p82
      %p84 = scmp.ne.s32.totalorder %s76, %s79
      %p85 = scmp.eq.s32.totalorder %s14, 0
      %p86 = por %p84, %p85
      %p87 = scmp.ne.s32.totalorder %s76, %s79
      %p88 = scmp.eq.s32.totalorder %s19, 3
      %p89 = por %p87, %p88
      %p90 = scmp.ne.s32.totalorder %s79, %s80
      %p91 = scmp.eq.s32.totalorder %s19, 0
      %p92 = por %p90, %p91
      %p93 = scmp.ne.s32.totalorder %s79, %s80
      %p94 = scmp.eq.s32.totalorder %s20, 3
      %p95 = por %p93, %p94
      %p97 = scmp.ne.s32.totalorder %s80, %s96
      %p98 = scmp.eq.s32.totalorder %s20, 0
      %p99 = por %p97, %p98
      %p100 = scmp.le.s32.totalorder 1, %s14
      %p101 = scmp.lt.s32.totalorder %s14, 5
      %p102 = pnand %p100, %p101
      %p103 = pneg %p102
      // Predicated region
      $region9: #{tpu_custom_call.1} parent=5 // pred_check
        _
      $region10: #{tpu_custom_call.1} parent=5 // pred_check_branch
        %105 = sbr.rel (%p102) target = $region12
      $region11: #{tpu_custom_call.1} parent=5 // pred_region
        %s106 = ssub.s32 %s14, 1
      $region12: #{tpu_custom_call.1} parent=5 // pred_fallthru
        _
      %p107 = scmp.lt.s32.totalorder %s14, 4
      // Predicated region
      $region13: #{tpu_custom_call.1} parent=5 // pred_check
        %p108 = pneg %p107
      $region14: #{tpu_custom_call.1} parent=5 // pred_check_branch
        %110 = sbr.rel (%p108) target = $region16
      $region15: #{tpu_custom_call.1} parent=5 // pred_region
        // Predicated region
        $region17: #{tpu_custom_call.1} parent=15 // pred_check
          %p111 = pneg %p34
        $region18: #{tpu_custom_call.1} parent=15 // pred_check_branch
          %113 = sbr.rel (%p111) target = $region20
        $region19: #{tpu_custom_call.1} parent=15 // pred_region
          %s114 = sand.u32 %s24, 1
          %s115 = scalar_lea.sflag [#allocation3], %s114
          %s116 = sand.u32 %s24, 1
          %s117 = smul.addr %s116, 32
          %s118 = scalar_lea.vmem [#allocation2], %s117
          %120 = vsyncadd %s115, 0
          %s121 = smul.addr %s14, 4
          %s122 = smul.addr %s121, 8
          %s123 = scalar_lea.hbm %s0, %s122
          %s125 = sshll.u32 %s123, 4
          %s126 = int_to_ptr.hbm [resolvable:$true] %s125
          %s127 = sshll.u32 %s118, 4
          %s128 = int_to_ptr.vmem [resolvable:$true] %s127
          %130 = dma.hbm_to_vmem [thread:$0]  %s126, 512, %s128, %s115
        $region20: #{tpu_custom_call.1} parent=15 // pred_fallthru
          _
        // Predicated region
        $region21: #{tpu_custom_call.1} parent=15 // pred_check
          %p131 = pneg %p60
        $region22: #{tpu_custom_call.1} parent=15 // pred_check_branch
          %133 = sbr.rel (%p131) target = $region24
        $region23: #{tpu_custom_call.1} parent=15 // pred_region
          %p134 = scmp.lt.s32.totalorder %s14, 3
          %s135 = scalar_select %p134, %s14, 3
          %s136 = smul.addr %s135, 4
          %s137 = smul.addr %s136, 8
          %s138 = scalar_lea.vmem %s1, %s137
        $region24: #{tpu_custom_call.1} parent=15 // pred_fallthru
          _
      $region16: #{tpu_custom_call.1} parent=5 // pred_fallthru
        _
      %p139 = scmp.le.s32.totalorder 1, %s14
      %p140 = scmp.lt.s32.totalorder %s14, 5
      %p141 = pnand %p139, %p140
      %p142 = pneg %p141
      // Predicated region
      $region25: #{tpu_custom_call.1} parent=5 // pred_check
        _
      $region26: #{tpu_custom_call.1} parent=5 // pred_check_branch
        %144 = sbr.rel (%p141) target = $region28
      $region27: #{tpu_custom_call.1} parent=5 // pred_region
        %s145 = ssub.s32 %s14, 1
        %s146 = sand.u32 %s27, 1
        %s147 = scalar_lea.sflag [#allocation3], %s146
        %s148 = sand.u32 %s27, 1
        %s149 = smul.addr %s148, 32
        %s150 = scalar_lea.vmem [#allocation2], %s149
        // Predicated region
        $region29: #{tpu_custom_call.1} parent=27 // pred_check
          %p151 = pneg %p40
        $region30: #{tpu_custom_call.1} parent=27 // pred_check_branch
          %153 = sbr.rel (%p151) target = $region32
        $region31: #{tpu_custom_call.1} parent=27 // pred_region
          %155 = dma.done %s147, 512
        $region32: #{tpu_custom_call.1} parent=27 // pred_fallthru
          _
        %s156 = sand.u32 %s27, 1
        %s157 = scalar_lea.sflag [#allocation3], %s156
        %s158 = sand.u32 %s27, 1
        %s159 = smul.addr %s158, 32
        %s160 = scalar_lea.vmem [#allocation2], %s159
        %p161 = pneg %p40
        %p162 = pneg %p37
        %p163 = scmp.lt.s32.totalorder %s19, 3
        %s164 = scalar_select %p163, %s19, 3
        %s165 = smul.addr %s164, 4
        %s166 = smul.addr %s165, 8
        %s167 = scalar_lea.vmem %s1, %s166
        %p168 = pneg %p66
        %p169 = pneg %p63
        %p170 = pneg %p92
        %p171 = pneg %p89
        %s172 = sand.u32 %s79, 1
        %s173 = scalar_lea.sflag [#allocation4], %s172
        %s174 = sand.u32 %s79, 1
        %s175 = smul.addr %s174, 32
        %s176 = scalar_lea.vmem [#allocation5], %s175
        %p177 = scmp.lt.s32.totalorder %s19, 3
        %s178 = scalar_select %p177, %s19, 3
        %s179 = smul.addr %s178, 4
        %s180 = smul.addr %s179, 8
        %s181 = scalar_lea.vmem %s1, %s180
        %v182 = vld [vmem:[%s150] sm:$0xff]
        %v183 = vld [vmem:[%s150 + $0x8] sm:$0xff]
        %v184 = vld [vmem:[%s150 + $0x10] sm:$0xff]
        %v185 = vld [vmem:[%s150 + $0x18] sm:$0xff]
        %v186 = vld [vmem:[%s181] sm:$0xff]
        %v187 = vld [vmem:[%s181 + $0x8] sm:$0xff]
        %v188 = vld [vmem:[%s181 + $0x10] sm:$0xff]
        %v189 = vld [vmem:[%s181 + $0x18] sm:$0xff]
        %v190 = vadd.f32 %v182, %v186
        %v191 = vadd.f32 %v183, %v187
        %v192 = vadd.f32 %v184, %v188
        %v193 = vadd.f32 %v185, %v189
        %194 = vst [vmem:[%s176] sm:$0xff] %v190
        %195 = vst [vmem:[%s176 + $0x8] sm:$0xff] %v191
        %196 = vst [vmem:[%s176 + $0x10] sm:$0xff] %v192
        %197 = vst [vmem:[%s176 + $0x18] sm:$0xff] %v193
        %s198 = sand.u32 %s79, 1
        %s199 = scalar_lea.sflag [#allocation4], %s198
        %s200 = sand.u32 %s79, 1
        %s201 = smul.addr %s200, 32
        %s202 = scalar_lea.vmem [#allocation5], %s201
        // Predicated region
        $region33: #{tpu_custom_call.1} parent=27 // pred_check
          %p203 = pneg %p89
        $region34: #{tpu_custom_call.1} parent=27 // pred_check_branch
          %205 = sbr.rel (%p203) target = $region36
        $region35: #{tpu_custom_call.1} parent=27 // pred_region
          %207 = vsyncadd %s199, 0
          %s208 = smul.addr %s19, 4
          %s209 = smul.addr %s208, 8
          %s210 = scalar_lea.hbm %s2, %s209
          %s212 = sshll.u32 %s202, 4
          %s213 = int_to_ptr.vmem [resolvable:$true] %s212
          %s214 = sshll.u32 %s210, 4
          %s215 = int_to_ptr.hbm [resolvable:$true] %s214
          %217 = dma.vmem_to_hbm [thread:$0]  %s213, 512, %s215, %s199
        $region36: #{tpu_custom_call.1} parent=27 // pred_fallthru
          _
      $region28: #{tpu_custom_call.1} parent=5 // pred_fallthru
        _
      %p218 = scmp.le.s32.totalorder 2, %s14
      // Predicated region
      $region37: #{tpu_custom_call.1} parent=5 // pred_check
        %p219 = pneg %p218
      $region38: #{tpu_custom_call.1} parent=5 // pred_check_branch
        %221 = sbr.rel (%p219) target = $region40
      $region39: #{tpu_custom_call.1} parent=5 // pred_region
        %s222 = ssub.s32 %s14, 2
        // Predicated region
        $region41: #{tpu_custom_call.1} parent=39 // pred_check
          %p223 = pneg %p95
        $region42: #{tpu_custom_call.1} parent=39 // pred_check_branch
          %225 = sbr.rel (%p223) target = $region44
        $region43: #{tpu_custom_call.1} parent=39 // pred_region
          %s226 = sand.u32 %s80, 1
          %s227 = scalar_lea.sflag [#allocation4], %s226
          %s228 = sand.u32 %s80, 1
          %s229 = smul.addr %s228, 32
          %s230 = scalar_lea.vmem [#allocation5], %s229
          %232 = dma.done %s227, 512
        $region44: #{tpu_custom_call.1} parent=39 // pred_fallthru
          _
      $region40: #{tpu_custom_call.1} parent=5 // pred_fallthru
        _
    $region6: #{tpu_custom_call.1} parent=1 // loop_footer
      %s18 = sadd.s32 1, %s14
    $region7: #{tpu_custom_call.1} parent=1 // loop_footer_branch
      %13 = sbr.rel target = $region3
    $region8: #{tpu_custom_call.1} parent=1 // loop_exit
      _
    %233 = vsyncpa [#allocation3], 1
    %s234 = scalar_lea.sflag [#allocation3], 1
    %235 = vsyncpa %s234, 1
    %236 = vsyncpa [#allocation4], 1
    %s237 = scalar_lea.sflag [#allocation4], 1
    %238 = vsyncpa %s237, 1

</llo_original>
